<compile_context>
chip_gen: v6e
topology: v6e:2x2x1
jax: 0.10.0
libtpu: 0.0.40
codegen_flags: <defaults>
</compile_context>

<pallas_src>
import functools

import jax
import jax.numpy as jnp
import numpy as np
from jax.experimental import pallas as pl


def _gather_bounds(T, V, size, npatches, sf):
    """Trace-time (numpy, integer) foveation geometry.

    Output feature f = (p*size + j)*V + var; source column k = t*V + kvar.
    Source (t, kvar) contributes to f  iff  kvar == var  and
        t - start in [sf**p * j - size*sf**p, sf**p * j - size*sf**p + sf**p - 1],
    i.e.  L[f,k] <= start <= U[f,k].  Variable mismatch is folded into impossible
    bounds so the in-kernel mask is just two compares.  The avg-pool 1/sf**p factor
    is returned separately (folded into the fc1/fc3 weights by the wrapper); source
    timesteps outside [0,T) simply have no column, matching F.pad's zeros.
    """
    NF = npatches * size * V
    K = T * V
    f = np.arange(NF)
    q, fvar = f // V, f % V            # pooled row (p*size + j), output variable
    p, j = q // size, q % size         # patch id, row inside the pooled patch
    k_p = sf ** p                      # pool kernel of patch p
    lo = k_p * j - size * k_p          # window lower offset of (t - start)
    hi = lo + k_p - 1
    k = np.arange(K)
    t, kvar = k // V, k % V            # source timestep, source variable
    L = (t[None, :] - hi[:, None]).astype(np.float64)   # (NF, K) lower bound on start
    U = (t[None, :] - lo[:, None]).astype(np.float64)   # (NF, K) upper bound on start
    mismatch = fvar[:, None] != kvar[None, :]
    L = np.where(mismatch, 1e6, L).astype(np.float32)
    U = np.where(mismatch, -1e6, U).astype(np.float32)
    scale = (1.0 / k_p).astype(np.float32)               # (NF,) per-feature pooling scale
    return np.stack([L, U]), scale


def _gn_kernel(x2_ref, l_ref, lu_ref, w13_ref, w4_ref, misc_ref, o_ref, *, T):
    # x2:   (B, 2, K)   [values | 10*intensity], flattened (time, variable) in lanes
    # l:    (B, 1)      glimpse location
    # lu:   (2, NF, K)  start-window bounds  (lu[0] = lower, lu[1] = upper)
    # w13:  (2, NF, H)  pool-scaled fc1 / fc3 weights
    # w4:   (2, H, H)   fc4 weight rows acting on [phi_out | i_out]
    # misc: (4, H)      [fc1_b, fc3_b, fc4 l_t-row, fc4_b]
    l = l_ref[...]                                              # (B, 1)
    start = jnp.floor(0.5 * ((l + 1.0) * T))                    # == torch .long() for l >= -1
    s3 = start.reshape(l.shape[0], 1, 1)                        # (B, 1, 1)

    # Binary gather mask: two compares against trace-time bounds (pool scale & x10 folded out).
    inwin = (s3 >= lu_ref[0]) & (s3 <= lu_ref[1])               # (B, NF, K)
    gmat = jnp.where(inwin, 1.0, 0.0)

    # Both foveations in ONE batched MXU contraction over the flattened (t, var) axis.
    fov = jnp.einsum('bck,bfk->bcf', x2_ref[...], gmat,
                     preferred_element_type=jnp.float32)        # (B, 2, NF)
    phi = fov[:, 0, :]                                          # (B, NF) raw window sums
    irep = fov[:, 1, :]                                         # (B, NF) (already x10)

    m = misc_ref[...]                                           # (4, H)
    h1 = jnp.maximum(
        jnp.dot(phi, w13_ref[0], preferred_element_type=jnp.float32) + m[0:1], 0.0)
    h3 = jnp.maximum(
        jnp.dot(irep, w13_ref[1], preferred_element_type=jnp.float32) + m[1:2], 0.0)
    g = (jnp.dot(h1, w4_ref[0], preferred_element_type=jnp.float32)
         + jnp.dot(h3, w4_ref[1], preferred_element_type=jnp.float32)
         + l * m[2:3]                                           # l_t column of fc4
         + m[3:4])
    o_ref[...] = jnp.maximum(g, 0.0).astype(o_ref.dtype)


def gn_forward(v, intensity, l_t, fc1_w, fc1_b, fc3_w, fc3_b, fc4_w, fc4_b,
               *, size=10, npatches=2, scaling_factor=4):
    """GN.forward (intensity=True). v == x[1], intensity == x[2], each (B, T, V=ninp).

    Weights are in (fan_in, fan_out) layout, i.e. nn.Linear.weight transposed.
    """
    B, T, V = v.shape
    nhid = fc1_w.shape[1]
    NF = npatches * size * V
    K = T * V
    assert fc1_w.shape == (NF, nhid) and fc3_w.shape == (NF, nhid)
    assert fc4_w.shape == (2 * nhid + 1, nhid) and l_t.shape == (B, 1)

    lu_np, scale_np = _gather_bounds(T, V, size, npatches, scaling_factor)

    # Wrapper-side layout plumbing only (tiny stacks, jit-fused / constant-foldable).
    x2 = jnp.stack([v.reshape(B, K), 10.0 * intensity.reshape(B, K)],
                   axis=1).astype(jnp.float32)                      # (B, 2, K)
    l2 = l_t.astype(jnp.float32)                                    # (B, 1)
    lu = jnp.asarray(lu_np)                                         # (2, NF, K)
    scale = jnp.asarray(scale_np)[:, None]                          # (NF, 1)
    w13 = jnp.stack([fc1_w.astype(jnp.float32) * scale,
                     fc3_w.astype(jnp.float32) * scale], axis=0)    # (2, NF, H)
    w4 = jnp.stack([fc4_w[:nhid], fc4_w[nhid + 1:]],
                   axis=0).astype(jnp.float32)                      # (2, H, H)
    misc = jnp.stack([fc1_b, fc3_b, fc4_w[nhid], fc4_b],
                     axis=0).astype(jnp.float32)                    # (4, H)

    flops = (5 * B * NF * K                 # mask build + select
             + 2 * B * 2 * NF * K           # fused foveation matmul
             + 2 * 2 * B * NF * nhid        # fc1 + fc3
             + 2 * 2 * B * nhid * nhid)     # fc4 (phi / intensity halves)
    bytes_accessed = 4 * (B * 2 * K + B + 2 * NF * K + 2 * NF * nhid
                          + 2 * nhid * nhid + 4 * nhid + B * nhid)

    return pl.pallas_call(
        functools.partial(_gn_kernel, T=T),
        out_shape=jax.ShapeDtypeStruct((B, nhid), jnp.float32),
        cost_estimate=pl.CostEstimate(flops=flops, transcendentals=0,
                                      bytes_accessed=bytes_accessed),
    )(x2, l2, lu, w13, w4, misc)


def _gn_reference(v, intensity, l_t, fc1_w, fc1_b, fc3_w, fc3_b, fc4_w, fc4_b,
                  *, size, npatches, scaling_factor):
    """Literal pure-JAX port of Retina.foveate + GN.forward for verification."""
    B, T, V = v.shape
    start = (0.5 * ((l_t + 1.0) * T)).astype(jnp.int32)[:, 0]
    zero = jnp.array(0, jnp.int32)

    def foveate(x):
        patches = []
        for p in range(npatches):
            k = scaling_factor ** p
            sp = size * k
            xp = jnp.pad(x, ((0, 0), (sp, sp), (0, 0)))
            sl = jax.vmap(
                lambda xb, sb: jax.lax.dynamic_slice(xb, (sb, zero), (sp, V)))(xp, start)
            patches.append(sl.reshape(B, size, k, V).mean(axis=2))
        return jnp.stack(patches, axis=1).reshape(B, -1)

    relu = lambda z: jnp.maximum(z, 0.0)
    phi_out = relu(foveate(v) @ fc1_w + fc1_b)
    i_out = relu(10.0 * foveate(intensity) @ fc3_w + fc3_b)
    return relu(jnp.concatenate([phi_out, l_t, i_out], axis=1) @ fc4_w + fc4_b)


if __name__ == "__main__":
    key = jax.random.PRNGKey(0)
    B, T, ninp = 2, 16, 4
    size, npatches, sf, nhid = 10, 2, 4, 32
    k1, k2, k3, k4, k5, k6, k7, k8, k9 = jax.random.split(key, 9)

    v = jax.random.normal(k1, (B, T, ninp), dtype=jnp.float32)
    intensity = jax.random.uniform(k2, (B, T, ninp), dtype=jnp.float32)
    l_t = jax.random.uniform(k3, (B, 1), minval=-1.0, maxval=1.0)
    x = (None, v, intensity)   # GN.forward reads x[1] (values) and x[2] (intensity)

    nin = npatches * size * ninp
    fc1_w = jax.random.normal(k4, (nin, nhid), dtype=jnp.float32) * 0.05
    fc1_b = jax.random.normal(k5, (nhid,), dtype=jnp.float32) * 0.05
    fc3_w = jax.random.normal(k6, (nin, nhid), dtype=jnp.float32) * 0.05
    fc3_b = jax.random.normal(k7, (nhid,), dtype=jnp.float32) * 0.05
    fc4_w = jax.random.normal(k8, (2 * nhid + 1, nhid), dtype=jnp.float32) * 0.05
    fc4_b = jax.random.normal(k9, (nhid,), dtype=jnp.float32) * 0.05

    fwd = jax.jit(functools.partial(gn_forward, size=size, npatches=npatches,
                                    scaling_factor=sf))
    g_t = fwd(x[1], x[2], l_t, fc1_w, fc1_b, fc3_w, fc3_b, fc4_w, fc4_b)
    jax.block_until_ready(g_t)

    ref = _gn_reference(x[1], x[2], l_t, fc1_w, fc1_b, fc3_w, fc3_b, fc4_w, fc4_b,
                        size=size, npatches=npatches, scaling_factor=sf)

    assert g_t.shape == (B, nhid), g_t.shape
    assert bool(jnp.all(jnp.isfinite(g_t)))
    assert bool(jnp.allclose(g_t, ref, rtol=1e-4, atol=1e-4)), \
        float(jnp.max(jnp.abs(g_t - ref)))
    print("KERNEL_OK")
</pallas_src>

<mosaic_0001>
module attributes {stable_mosaic.version = 11 : i64} {
  func.func @_gn_kernel(%arg0: memref<2x2x64xf32, #tpu.memory_space<vmem>>, %arg1: memref<2x1xf32, #tpu.memory_space<vmem>>, %arg2: memref<2x80x64xf32, #tpu.memory_space<vmem>>, %arg3: memref<2x80x32xf32, #tpu.memory_space<vmem>>, %arg4: memref<2x32x32xf32, #tpu.memory_space<vmem>>, %arg5: memref<4x32xf32, #tpu.memory_space<vmem>>, %arg6: memref<2x32xf32, #tpu.memory_space<vmem>>) attributes {dimension_semantics = [], scalar_prefetch = 0 : i64, scratch_operands = 0 : i64, tpu.core_type = #tpu.core_type<tc>} {
    %c0 = arith.constant 0 : index
    %c0_0 = arith.constant 0 : index
    %0 = vector.load %arg1[%c0, %c0_0] : memref<2x1xf32, #tpu.memory_space<vmem>>, vector<2x1xf32>
    %cst = arith.constant 1.000000e+00 : f32
    %1 = vector.broadcast %cst : f32 to vector<2x1xf32>
    %2 = arith.addf %0, %1 : vector<2x1xf32>
    %cst_1 = arith.constant 1.600000e+01 : f32
    %3 = vector.broadcast %cst_1 : f32 to vector<2x1xf32>
    %4 = arith.mulf %2, %3 : vector<2x1xf32>
    %cst_2 = arith.constant 5.000000e-01 : f32
    %5 = vector.broadcast %cst_2 : f32 to vector<2x1xf32>
    %6 = arith.mulf %5, %4 : vector<2x1xf32>
    %7 = math.floor %6 : vector<2x1xf32>
    %8 = vector.shape_cast %7 : vector<2x1xf32> to vector<2x1x1xf32>
    %c0_3 = arith.constant 0 : index
    %c0_4 = arith.constant 0 : index
    %c0_5 = arith.constant 0 : index
    %9 = vector.load %arg2[%c0_3, %c0_4, %c0_5] : memref<2x80x64xf32, #tpu.memory_space<vmem>>, vector<1x80x64xf32>
    %10 = vector.shape_cast %9 : vector<1x80x64xf32> to vector<80x64xf32>
    %11 = vector.shape_cast %10 : vector<80x64xf32> to vector<1x80x64xf32>
    %12 = vector.broadcast %8 : vector<2x1x1xf32> to vector<2x80x64xf32>
    %13 = vector.broadcast %11 : vector<1x80x64xf32> to vector<2x80x64xf32>
    %14 = arith.cmpf oge, %12, %13 : vector<2x80x64xf32>
    %c1 = arith.constant 1 : index
    %c0_6 = arith.constant 0 : index
    %c0_7 = arith.constant 0 : index
    %15 = vector.load %arg2[%c1, %c0_6, %c0_7] : memref<2x80x64xf32, #tpu.memory_space<vmem>>, vector<1x80x64xf32>
    %16 = vector.shape_cast %15 : vector<1x80x64xf32> to vector<80x64xf32>
    %17 = vector.shape_cast %16 : vector<80x64xf32> to vector<1x80x64xf32>
    %18 = vector.broadcast %8 : vector<2x1x1xf32> to vector<2x80x64xf32>
    %19 = vector.broadcast %17 : vector<1x80x64xf32> to vector<2x80x64xf32>
    %20 = arith.cmpf ole, %18, %19 : vector<2x80x64xf32>
    %21 = arith.andi %14, %20 : vector<2x80x64xi1>
    %cst_8 = arith.constant 1.000000e+00 : f32
    %cst_9 = arith.constant 0.000000e+00 : f32
    %22 = vector.broadcast %cst_8 : f32 to vector<2x80x64xf32>
    %23 = vector.broadcast %cst_9 : f32 to vector<2x80x64xf32>
    %24 = arith.select %21, %22, %23 : vector<2x80x64xi1>, vector<2x80x64xf32>
    %c0_10 = arith.constant 0 : index
    %c0_11 = arith.constant 0 : index
    %c0_12 = arith.constant 0 : index
    %25 = vector.load %arg0[%c0_10, %c0_11, %c0_12] : memref<2x2x64xf32, #tpu.memory_space<vmem>>, vector<2x2x64xf32>
    "tpu.trace_start"() <{level = 10 : i32, message = "bck,bfk->bcf"}> : () -> ()
    %cst_13 = arith.constant dense<0.000000e+00> : vector<2x2x80xf32>
    %26 = tpu.matmul %25, %24, %cst_13 {dimension_numbers = #tpu.dot_dimension_numbers<[2], [2], [1], [1], [0, 0, 0, 1, 1, 1], [0], [0]>} : vector<2x2x64xf32>, vector<2x80x64xf32>, vector<2x2x80xf32> -> vector<2x2x80xf32>
    "tpu.trace_stop"() : () -> ()
    %27 = vector.extract_strided_slice %26 {offsets = [0, 0, 0], sizes = [2, 1, 80], strides = [1, 1, 1]} : vector<2x2x80xf32> to vector<2x1x80xf32>
    %28 = vector.shape_cast %27 : vector<2x1x80xf32> to vector<2x80xf32>
    %29 = vector.extract_strided_slice %26 {offsets = [0, 1, 0], sizes = [2, 1, 80], strides = [1, 1, 1]} : vector<2x2x80xf32> to vector<2x1x80xf32>
    %30 = vector.shape_cast %29 : vector<2x1x80xf32> to vector<2x80xf32>
    %c0_14 = arith.constant 0 : index
    %c0_15 = arith.constant 0 : index
    %31 = vector.load %arg5[%c0_14, %c0_15] : memref<4x32xf32, #tpu.memory_space<vmem>>, vector<4x32xf32>
    %c0_16 = arith.constant 0 : index
    %c0_17 = arith.constant 0 : index
    %c0_18 = arith.constant 0 : index
    %32 = vector.load %arg3[%c0_16, %c0_17, %c0_18] : memref<2x80x32xf32, #tpu.memory_space<vmem>>, vector<1x80x32xf32>
    %33 = vector.shape_cast %32 : vector<1x80x32xf32> to vector<80x32xf32>
    %cst_19 = arith.constant dense<0.000000e+00> : vector<2x32xf32>
    %34 = tpu.matmul %28, %33, %cst_19 {dimension_numbers = #tpu.dot_dimension_numbers<[1], [0], [0], [1], [0, 0, 1, 1], [], []>} : vector<2x80xf32>, vector<80x32xf32>, vector<2x32xf32> -> vector<2x32xf32>
    %35 = vector.extract_strided_slice %31 {offsets = [0, 0], sizes = [1, 32], strides = [1, 1]} : vector<4x32xf32> to vector<1x32xf32>
    %36 = vector.broadcast %35 : vector<1x32xf32> to vector<2x32xf32>
    %37 = arith.addf %34, %36 : vector<2x32xf32>
    %cst_20 = arith.constant 0.000000e+00 : f32
    %38 = vector.broadcast %cst_20 : f32 to vector<2x32xf32>
    %39 = arith.maximumf %37, %38 : vector<2x32xf32>
    %c1_21 = arith.constant 1 : index
    %c0_22 = arith.constant 0 : index
    %c0_23 = arith.constant 0 : index
    %40 = vector.load %arg3[%c1_21, %c0_22, %c0_23] : memref<2x80x32xf32, #tpu.memory_space<vmem>>, vector<1x80x32xf32>
    %41 = vector.shape_cast %40 : vector<1x80x32xf32> to vector<80x32xf32>
    %cst_24 = arith.constant dense<0.000000e+00> : vector<2x32xf32>
    %42 = tpu.matmul %30, %41, %cst_24 {dimension_numbers = #tpu.dot_dimension_numbers<[1], [0], [0], [1], [0, 0, 1, 1], [], []>} : vector<2x80xf32>, vector<80x32xf32>, vector<2x32xf32> -> vector<2x32xf32>
    %43 = vector.extract_strided_slice %31 {offsets = [1, 0], sizes = [1, 32], strides = [1, 1]} : vector<4x32xf32> to vector<1x32xf32>
    %44 = vector.broadcast %43 : vector<1x32xf32> to vector<2x32xf32>
    %45 = arith.addf %42, %44 : vector<2x32xf32>
    %cst_25 = arith.constant 0.000000e+00 : f32
    %46 = vector.broadcast %cst_25 : f32 to vector<2x32xf32>
    %47 = arith.maximumf %45, %46 : vector<2x32xf32>
    %c0_26 = arith.constant 0 : index
    %c0_27 = arith.constant 0 : index
    %c0_28 = arith.constant 0 : index
    %48 = vector.load %arg4[%c0_26, %c0_27, %c0_28] : memref<2x32x32xf32, #tpu.memory_space<vmem>>, vector<1x32x32xf32>
    %49 = vector.shape_cast %48 : vector<1x32x32xf32> to vector<32x32xf32>
    %cst_29 = arith.constant dense<0.000000e+00> : vector<2x32xf32>
    %50 = tpu.matmul %39, %49, %cst_29 {dimension_numbers = #tpu.dot_dimension_numbers<[1], [0], [0], [1], [0, 0, 1, 1], [], []>} : vector<2x32xf32>, vector<32x32xf32>, vector<2x32xf32> -> vector<2x32xf32>
    %c1_30 = arith.constant 1 : index
    %c0_31 = arith.constant 0 : index
    %c0_32 = arith.constant 0 : index
    %51 = vector.load %arg4[%c1_30, %c0_31, %c0_32] : memref<2x32x32xf32, #tpu.memory_space<vmem>>, vector<1x32x32xf32>
    %52 = vector.shape_cast %51 : vector<1x32x32xf32> to vector<32x32xf32>
    %cst_33 = arith.constant dense<0.000000e+00> : vector<2x32xf32>
    %53 = tpu.matmul %47, %52, %cst_33 {dimension_numbers = #tpu.dot_dimension_numbers<[1], [0], [0], [1], [0, 0, 1, 1], [], []>} : vector<2x32xf32>, vector<32x32xf32>, vector<2x32xf32> -> vector<2x32xf32>
    %54 = arith.addf %50, %53 : vector<2x32xf32>
    %55 = vector.extract_strided_slice %31 {offsets = [2, 0], sizes = [1, 32], strides = [1, 1]} : vector<4x32xf32> to vector<1x32xf32>
    %56 = vector.broadcast %0 : vector<2x1xf32> to vector<2x32xf32>
    %57 = vector.broadcast %55 : vector<1x32xf32> to vector<2x32xf32>
    %58 = arith.mulf %56, %57 : vector<2x32xf32>
    %59 = arith.addf %54, %58 : vector<2x32xf32>
    %60 = vector.extract_strided_slice %31 {offsets = [3, 0], sizes = [1, 32], strides = [1, 1]} : vector<4x32xf32> to vector<1x32xf32>
    %61 = vector.broadcast %60 : vector<1x32xf32> to vector<2x32xf32>
    %62 = arith.addf %59, %61 : vector<2x32xf32>
    %cst_34 = arith.constant 0.000000e+00 : f32
    %63 = vector.broadcast %cst_34 : f32 to vector<2x32xf32>
    %64 = arith.maximumf %62, %63 : vector<2x32xf32>
    %c0_35 = arith.constant 0 : index
    %c0_36 = arith.constant 0 : index
    %65 = vector.load %arg6[%c0_35, %c0_36] : memref<2x32xf32, #tpu.memory_space<vmem>>, vector<2x32xf32>
    tpu.vector_store %arg6[%c0_35, %c0_36], %64 {strides = array<i32>} : memref<2x32xf32, #tpu.memory_space<vmem>>, vector<2x32xf32>,
    return
  }
}

</mosaic_0001>

<llo_original>
// kernel: gn_forward.1
$region0: #{gn_forward.1}
  #allocation0 [shape = 'u32[]', space=smem, size = 0x4, offset = 0x4, fixed_abs, tag = 'smem constant byte address 0x4 - core index']
  #allocation1 [shape = 'u32[144,128]{1,0:T(1,128)}', space=vmem, size = 0x12000, scoped, tag = 'internal scratch']
  %s0 = inlined_call_operand.vmem [shape: f32[2,2,64], index: 0, kind: input, shape index: {}]
  %s1 = inlined_call_operand.vmem [shape: f32[2,1], index: 1, kind: input, shape index: {}]
  %s2 = inlined_call_operand.vmem [shape: f32[2,80,64], index: 2, kind: input, shape index: {}]
  %s3 = inlined_call_operand.vmem [shape: f32[2,80,32], index: 3, kind: input, shape index: {}]
  %s4 = inlined_call_operand.vmem [shape: f32[2,32,32], index: 4, kind: input, shape index: {}]
  %s5 = inlined_call_operand.vmem [shape: f32[4,32], index: 5, kind: input, shape index: {}]
  %s6 = inlined_call_operand.hbm [shape: f32[2,32], index: 6, kind: output, shape index: {}]
  %s7 = sld [smem:[#allocation0]]
  $region34: #{gn_forward.1} parent=0
    _
  %s9 = ssub.s32 1, %s7
  %s10 = scalar_select 0, %s9, %s7
  $region1: #{gn_forward.1} parent=0
    #allocation2 [shape = 'u8[1024]{0}', space=vmem, size = 0x400, scoped, tag = 'output window, operand 0, single buffered']
    #allocation3 [shape = 's32[1]{0}', space=sflag, size = 0x4, scoped, tag = 'scoped memory for gn_forward.1']
    %11 = vsyncpa [#allocation3], 0
    // Predicated region
    $region2: #{gn_forward.1} parent=1 // pred_check
      _
    $region3: #{gn_forward.1} parent=1 // pred_check_branch
      %13 = sbr.rel (0) target = $region5
    $region4: #{gn_forward.1} parent=1 // pred_region
      _
    $region5: #{gn_forward.1} parent=1 // pred_fallthru
      _
    // Predicated region
    $region6: #{gn_forward.1} parent=1 // pred_check
      _
    $region7: #{gn_forward.1} parent=1 // pred_check_branch
      %15 = sbr.rel (0) target = $region9
    $region8: #{gn_forward.1} parent=1 // pred_region
      _
    $region9: #{gn_forward.1} parent=1 // pred_fallthru
      _
    // Predicated region
    $region10: #{gn_forward.1} parent=1 // pred_check
      _
    $region11: #{gn_forward.1} parent=1 // pred_check_branch
      %17 = sbr.rel (0) target = $region13
    $region12: #{gn_forward.1} parent=1 // pred_region
      _
    $region13: #{gn_forward.1} parent=1 // pred_fallthru
      _
    // Predicated region
    $region14: #{gn_forward.1} parent=1 // pred_check
      _
    $region15: #{gn_forward.1} parent=1 // pred_check_branch
      %19 = sbr.rel (0) target = $region17
    $region16: #{gn_forward.1} parent=1 // pred_region
      _
    $region17: #{gn_forward.1} parent=1 // pred_fallthru
      _
    // Predicated region
    $region18: #{gn_forward.1} parent=1 // pred_check
      _
    $region19: #{gn_forward.1} parent=1 // pred_check_branch
      %21 = sbr.rel (0) target = $region21
    $region20: #{gn_forward.1} parent=1 // pred_region
      _
    $region21: #{gn_forward.1} parent=1 // pred_fallthru
      _
    // Predicated region
    $region22: #{gn_forward.1} parent=1 // pred_check
      _
    $region23: #{gn_forward.1} parent=1 // pred_check_branch
      %23 = sbr.rel (0) target = $region25
    $region24: #{gn_forward.1} parent=1 // pred_region
      _
    $region25: #{gn_forward.1} parent=1 // pred_fallthru
      _
    %v24 = vld [vmem:[%s1] sm:$0x3]
    %v25 = vadd.f32 %v24, 1.0
    %v26 = vmul.f32 %v25, 16.0
    %v27 = vmul.f32 %v26, 0.5
    %v28 = vfloor.f32 %v27
    %v31 = vunpack.c.l.s4 1966171168
    %v32 = vunpack.c.0.s8 %v31
    %v33 = vlaneseq
    %v34 = vshrl.u32 %v33, 7
    %v35 = vsub.s32 %v32, %v34
    %v36 = vrot.slane %v28, %v35
    %v37 = vcombine.high %v36, %v36
    %v39 = vunpack.c.l.s4 1966171168
    %v40 = vunpack.c.0.s8 %v39
    %v41 = vlaneseq
    %v42 = vshrl.u32 %v41, 7
    %v43 = vsub.s32 %v40, %v42
    %v44 = vrot.slane %v36, %v43
    %v46 = vunpack.c.l.s4 1966171168
    %v47 = vunpack.c.0.s8 %v46
    %v48 = vlaneseq
    %v49 = vshrl.u32 %v48, 7
    %v50 = vsub.s32 %v47, %v49
    %v51 = vrot.slane %v37, %v50
    %v52 = vld [vmem:[%s2] sm:$0xff]
    %v53 = vld [vmem:[%s2 + $0x8] sm:$0xff]
    %v54 = vld [vmem:[%s2 + $0x10] sm:$0xff]
    %v55 = vld [vmem:[%s2 + $0x18] sm:$0xff]
    %v56 = vld [vmem:[%s2 + $0x20] sm:$0xff]
    %v57 = vld [vmem:[%s2 + $0x28] sm:$0xff]
    %v58 = vld [vmem:[%s2 + $0x30] sm:$0xff]
    %v59 = vld [vmem:[%s2 + $0x38] sm:$0xff]
    %v60 = vld [vmem:[%s2 + $0x40] sm:$0xff]
    %v61 = vld [vmem:[%s2 + $0x48] sm:$0xff]
    %v62 = vlaneseq
    %v63 = vshrl.u32 %v62, 7
    %v64 = vsub.s32 0, %v63
    %v65 = vrot.slane %v44, %v64
    %v66 = vlaneseq
    %v67 = vshrl.u32 %v66, 7
    %v68 = vsub.s32 0, %v67
    %v69 = vrot.slane %v51, %v68
    %70 = vset.pattern.permute.xlu0 0
    %71 = vperm.xlu0 %70, %v65
    %v72 = vpop.permute.xlu0 %71
    %74 = vset.pattern.permute.xlu0 0
    %75 = vperm.xlu0 %74, %v69
    %v76 = vpop.permute.xlu0 %75
    %vm78 = vcmp.ge.f32.partialorder %v72, %v52
    %vm79 = vcmp.ge.f32.partialorder %v72, %v53
    %vm80 = vcmp.ge.f32.partialorder %v72, %v54
    %vm81 = vcmp.ge.f32.partialorder %v72, %v55
    %vm82 = vcmp.ge.f32.partialorder %v72, %v56
    %vm83 = vcmp.ge.f32.partialorder %v72, %v57
    %vm84 = vcmp.ge.f32.partialorder %v72, %v58
    %vm85 = vcmp.ge.f32.partialorder %v72, %v59
    %vm86 = vcmp.ge.f32.partialorder %v72, %v60
    %vm87 = vcmp.ge.f32.partialorder %v72, %v61
    %vm88 = vcmp.ge.f32.partialorder %v76, %v52
    %vm89 = vcmp.ge.f32.partialorder %v76, %v53
    %vm90 = vcmp.ge.f32.partialorder %v76, %v54
    %vm91 = vcmp.ge.f32.partialorder %v76, %v55
    %vm92 = vcmp.ge.f32.partialorder %v76, %v56
    %vm93 = vcmp.ge.f32.partialorder %v76, %v57
    %vm94 = vcmp.ge.f32.partialorder %v76, %v58
    %vm95 = vcmp.ge.f32.partialorder %v76, %v59
    %vm96 = vcmp.ge.f32.partialorder %v76, %v60
    %vm97 = vcmp.ge.f32.partialorder %v76, %v61
    %s98 = scalar_lea.vmem %s2, 80
    %v99 = vld [vmem:[%s98] sm:$0xff]
    %v100 = vld [vmem:[%s98 + $0x8] sm:$0xff]
    %v101 = vld [vmem:[%s98 + $0x10] sm:$0xff]
    %v102 = vld [vmem:[%s98 + $0x18] sm:$0xff]
    %v103 = vld [vmem:[%s98 + $0x20] sm:$0xff]
    %v104 = vld [vmem:[%s98 + $0x28] sm:$0xff]
    %v105 = vld [vmem:[%s98 + $0x30] sm:$0xff]
    %v106 = vld [vmem:[%s98 + $0x38] sm:$0xff]
    %v107 = vld [vmem:[%s98 + $0x40] sm:$0xff]
    %v108 = vld [vmem:[%s98 + $0x48] sm:$0xff]
    %vm109 = vcmp.le.f32.partialorder %v72, %v99
    %vm110 = vcmp.le.f32.partialorder %v72, %v100
    %vm111 = vcmp.le.f32.partialorder %v72, %v101
    %vm112 = vcmp.le.f32.partialorder %v72, %v102
    %vm113 = vcmp.le.f32.partialorder %v72, %v103
    %vm114 = vcmp.le.f32.partialorder %v72, %v104
    %vm115 = vcmp.le.f32.partialorder %v72, %v105
    %vm116 = vcmp.le.f32.partialorder %v72, %v106
    %vm117 = vcmp.le.f32.partialorder %v72, %v107
    %vm118 = vcmp.le.f32.partialorder %v72, %v108
    %vm119 = vcmp.le.f32.partialorder %v76, %v99
    %vm120 = vcmp.le.f32.partialorder %v76, %v100
    %vm121 = vcmp.le.f32.partialorder %v76, %v101
    %vm122 = vcmp.le.f32.partialorder %v76, %v102
    %vm123 = vcmp.le.f32.partialorder %v76, %v103
    %vm124 = vcmp.le.f32.partialorder %v76, %v104
    %vm125 = vcmp.le.f32.partialorder %v76, %v105
    %vm126 = vcmp.le.f32.partialorder %v76, %v106
    %vm127 = vcmp.le.f32.partialorder %v76, %v107
    %vm128 = vcmp.le.f32.partialorder %v76, %v108
    %vm129 = vmand %vm78, %vm109
    %vm130 = vmand %vm79, %vm110
    %vm131 = vmand %vm80, %vm111
    %vm132 = vmand %vm81, %vm112
    %vm133 = vmand %vm82, %vm113
    %vm134 = vmand %vm83, %vm114
    %vm135 = vmand %vm84, %vm115
    %vm136 = vmand %vm85, %vm116
    %vm137 = vmand %vm86, %vm117
    %vm138 = vmand %vm87, %vm118
    %vm139 = vmand %vm88, %vm119
    %vm140 = vmand %vm89, %vm120
    %vm141 = vmand %vm90, %vm121
    %vm142 = vmand %vm91, %vm122
    %vm143 = vmand %vm92, %vm123
    %vm144 = vmand %vm93, %vm124
    %vm145 = vmand %vm94, %vm125
    %vm146 = vmand %vm95, %vm126
    %vm147 = vmand %vm96, %vm127
    %vm148 = vmand %vm97, %vm128
    %v149 = vsel %vm129, 1.0, 0.0
    %v150 = vsel %vm130, 1.0, 0.0
    %v151 = vsel %vm131, 1.0, 0.0
    %v152 = vsel %vm132, 1.0, 0.0
    %v153 = vsel %vm133, 1.0, 0.0
    %v154 = vsel %vm134, 1.0, 0.0
    %v155 = vsel %vm135, 1.0, 0.0
    %v156 = vsel %vm136, 1.0, 0.0
    %v157 = vsel %vm137, 1.0, 0.0
    %v158 = vsel %vm138, 1.0, 0.0
    %v159 = vsel %vm139, 1.0, 0.0
    %v160 = vsel %vm140, 1.0, 0.0
    %v161 = vsel %vm141, 1.0, 0.0
    %v162 = vsel %vm142, 1.0, 0.0
    %v163 = vsel %vm143, 1.0, 0.0
    %v164 = vsel %vm144, 1.0, 0.0
    %v165 = vsel %vm145, 1.0, 0.0
    %v166 = vsel %vm146, 1.0, 0.0
    %v167 = vsel %vm147, 1.0, 0.0
    %v168 = vsel %vm148, 1.0, 0.0
    %v169 = vld [vmem:[%s0] sm:$0x3]
    %v170 = vld [vmem:[%s0 + $0x2] sm:$0x3]
    %vm171 = vcmask 523264
    %v173 = vsel %vm171, %v169, 0
    %v176 = vsel %vm171, %v149, 0
    %v179 = vsel %vm171, %v150, 0
    %v182 = vsel %vm171, %v151, 0
    %v185 = vsel %vm171, %v152, 0
    %v188 = vsel %vm171, %v153, 0
    %v191 = vsel %vm171, %v154, 0
    %v194 = vsel %vm171, %v155, 0
    %v197 = vsel %vm171, %v156, 0
    %v200 = vsel %vm171, %v157, 0
    %v203 = vsel %vm171, %v158, 0
    %205 = vmatprep.subr.mxu0 0.0
    %206 = vmatpush1.xpose.msra.mxu0 0.0
    %207 = vmatprep.subr.mxu0 0.0
    %208 = vmatpush1.xpose.msra.mxu0 0.0
    %209 = vmatprep.subr.mxu0 0.0
    %210 = vmatpush1.xpose.msra.mxu0 0.0
    %211 = vmatprep.subr.mxu0 0.0
    %212 = vmatpush1.xpose.msra.mxu0 0.0
    %213 = vmatprep.subr.mxu0 0.0
    %214 = vmatpush1.xpose.msra.mxu0 0.0
    %215 = vmatprep.subr.mxu0 0.0
    %216 = vmatpush1.xpose.msra.mxu0 0.0
    %217 = vmatprep.subr.mxu0 0.0
    %218 = vmatpush1.xpose.msra.mxu0 %v203
    %219 = vmatprep.subr.mxu0 0.0
    %220 = vmatpush1.xpose.msra.mxu0 %v200
    %221 = vmatprep.subr.mxu0 0.0
    %222 = vmatpush1.xpose.msra.mxu0 %v197
    %223 = vmatprep.subr.mxu0 0.0
    %224 = vmatpush1.xpose.msra.mxu0 %v194
    %225 = vmatprep.subr.mxu0 0.0
    %226 = vmatpush1.xpose.msra.mxu0 %v191
    %227 = vmatprep.subr.mxu0 0.0
    %228 = vmatpush1.xpose.msra.mxu0 %v188
    %229 = vmatprep.subr.mxu0 0.0
    %230 = vmatpush1.xpose.msra.mxu0 %v185
    %231 = vmatprep.subr.mxu0 0.0
    %232 = vmatpush1.xpose.msra.mxu0 %v182
    %233 = vmatprep.subr.mxu0 0.0
    %234 = vmatpush1.xpose.msra.mxu0 %v179
    %235 = vmatprep.subr.mxu0 0.0
    %236 = vmatpush1.xpose.msra.mxu0 %v176
    %237 = vmatprep.subr.mxu0 0.0
    %238 = vmatpush2.xpose.msra.mxu0 0.0
    %239 = vmatprep.subr.mxu0 0.0
    %240 = vmatpush2.xpose.msra.mxu0 0.0
    %241 = vmatprep.subr.mxu0 0.0
    %242 = vmatpush2.xpose.msra.mxu0 0.0
    %243 = vmatprep.subr.mxu0 0.0
    %244 = vmatpush2.xpose.msra.mxu0 0.0
    %245 = vmatprep.subr.mxu0 0.0
    %246 = vmatpush2.xpose.msra.mxu0 0.0
    %247 = vmatprep.subr.mxu0 0.0
    %248 = vmatpush2.xpose.msra.mxu0 0.0
    %249 = vmatprep.subr.mxu0 0.0
    %250 = vmatpush2.xpose.msra.mxu0 0.0
    %251 = vmatprep.subr.mxu0 0.0
    %252 = vmatpush2.xpose.msra.mxu0 0.0
    %253 = vmatprep.subr.mxu0 0.0
    %254 = vmatpush2.xpose.msra.mxu0 0.0
    %255 = vmatprep.subr.mxu0 0.0
    %256 = vmatpush2.xpose.msra.mxu0 0.0
    %257 = vmatprep.subr.mxu0 0.0
    %258 = vmatpush2.xpose.msra.mxu0 0.0
    %259 = vmatprep.subr.mxu0 0.0
    %260 = vmatpush2.xpose.msra.mxu0 0.0
    %261 = vmatprep.subr.mxu0 0.0
    %262 = vmatpush2.xpose.msra.mxu0 0.0
    %263 = vmatprep.subr.mxu0 0.0
    %264 = vmatpush2.xpose.msra.mxu0 0.0
    %265 = vmatprep.subr.mxu0 0.0
    %266 = vmatpush2.xpose.msra.mxu0 0.0
    %267 = vmatprep.subr.mxu0 0.0
    %268 = vmatpush2.xpose.msra.mxu0 0.0
    %269 = vmatprep.mubr.f32.mxu0 0.0
    %270 = vmatmul.mubr.f32.gmra.mxu0 %v173
    %v271 = vpop.f32.mrf.mxu0
    %v272 = vadd.f32 0.0, %v271
    %v273 = vpop.f32.mrf.mxu0
    %274 = vdwg.mxu0
    %v276 = vsel %vm171, %v170, 0
    %v279 = vsel %vm171, %v159, 0
    %v282 = vsel %vm171, %v160, 0
    %v285 = vsel %vm171, %v161, 0
    %v288 = vsel %vm171, %v162, 0
    %v291 = vsel %vm171, %v163, 0
    %v294 = vsel %vm171, %v164, 0
    %v297 = vsel %vm171, %v165, 0
    %v300 = vsel %vm171, %v166, 0
    %v303 = vsel %vm171, %v167, 0
    %v306 = vsel %vm171, %v168, 0
    %308 = vmatprep.subr.mxu0 0.0
    %309 = vmatpush1.xpose.msra.mxu0 0.0
    %310 = vmatprep.subr.mxu0 0.0
    %311 = vmatpush1.xpose.msra.mxu0 0.0
    %312 = vmatprep.subr.mxu0 0.0
    %313 = vmatpush1.xpose.msra.mxu0 0.0
    %314 = vmatprep.subr.mxu0 0.0
    %315 = vmatpush1.xpose.msra.mxu0 0.0
    %316 = vmatprep.subr.mxu0 0.0
    %317 = vmatpush1.xpose.msra.mxu0 0.0
    %318 = vmatprep.subr.mxu0 0.0
    %319 = vmatpush1.xpose.msra.mxu0 0.0
    %320 = vmatprep.subr.mxu0 0.0
    %321 = vmatpush1.xpose.msra.mxu0 %v306
    %322 = vmatprep.subr.mxu0 0.0
    %323 = vmatpush1.xpose.msra.mxu0 %v303
    %324 = vmatprep.subr.mxu0 0.0
    %325 = vmatpush1.xpose.msra.mxu0 %v300
    %326 = vmatprep.subr.mxu0 0.0
    %327 = vmatpush1.xpose.msra.mxu0 %v297
    %328 = vmatprep.subr.mxu0 0.0
    %329 = vmatpush1.xpose.msra.mxu0 %v294
    %330 = vmatprep.subr.mxu0 0.0
    %331 = vmatpush1.xpose.msra.mxu0 %v291
    %332 = vmatprep.subr.mxu0 0.0
    %333 = vmatpush1.xpose.msra.mxu0 %v288
    %334 = vmatprep.subr.mxu0 0.0
    %335 = vmatpush1.xpose.msra.mxu0 %v285
    %336 = vmatprep.subr.mxu0 0.0
    %337 = vmatpush1.xpose.msra.mxu0 %v282
    %338 = vmatprep.subr.mxu0 0.0
    %339 = vmatpush1.xpose.msra.mxu0 %v279
    %340 = vmatprep.subr.mxu0 0.0
    %341 = vmatpush2.xpose.msra.mxu0 0.0
    %342 = vmatprep.subr.mxu0 0.0
    %343 = vmatpush2.xpose.msra.mxu0 0.0
    %344 = vmatprep.subr.mxu0 0.0
    %345 = vmatpush2.xpose.msra.mxu0 0.0
    %346 = vmatprep.subr.mxu0 0.0
    %347 = vmatpush2.xpose.msra.mxu0 0.0
    %348 = vmatprep.subr.mxu0 0.0
    %349 = vmatpush2.xpose.msra.mxu0 0.0
    %350 = vmatprep.subr.mxu0 0.0
    %351 = vmatpush2.xpose.msra.mxu0 0.0
    %352 = vmatprep.subr.mxu0 0.0
    %353 = vmatpush2.xpose.msra.mxu0 0.0
    %354 = vmatprep.subr.mxu0 0.0
    %355 = vmatpush2.xpose.msra.mxu0 0.0
    %356 = vmatprep.subr.mxu0 0.0
    %357 = vmatpush2.xpose.msra.mxu0 0.0
    %358 = vmatprep.subr.mxu0 0.0
    %359 = vmatpush2.xpose.msra.mxu0 0.0
    %360 = vmatprep.subr.mxu0 0.0
    %361 = vmatpush2.xpose.msra.mxu0 0.0
    %362 = vmatprep.subr.mxu0 0.0
    %363 = vmatpush2.xpose.msra.mxu0 0.0
    %364 = vmatprep.subr.mxu0 0.0
    %365 = vmatpush2.xpose.msra.mxu0 0.0
    %366 = vmatprep.subr.mxu0 0.0
    %367 = vmatpush2.xpose.msra.mxu0 0.0
    %368 = vmatprep.subr.mxu0 0.0
    %369 = vmatpush2.xpose.msra.mxu0 0.0
    %370 = vmatprep.subr.mxu0 0.0
    %371 = vmatpush2.xpose.msra.mxu0 0.0
    %372 = vmatprep.mubr.f32.mxu0 0.0
    %373 = vmatmul.mubr.f32.gmra.mxu0 %v276
    %v374 = vpop.f32.mrf.mxu0
    %v375 = vadd.f32 0.0, %v374
    %v376 = vpop.f32.mrf.mxu0
    %377 = vdwg.mxu0
    %v378 = vld [vmem:[%s5] sm:$0xf]
    %v379 = vld [vmem:[%s3] sm:$0xff]
    %v380 = vld [vmem:[%s3 + $0x8] sm:$0xff]
    %v381 = vld [vmem:[%s3 + $0x10] sm:$0xff]
    %v382 = vld [vmem:[%s3 + $0x18] sm:$0xff]
    %v383 = vld [vmem:[%s3 + $0x20] sm:$0xff]
    %v384 = vld [vmem:[%s3 + $0x28] sm:$0xff]
    %v385 = vld [vmem:[%s3 + $0x30] sm:$0xff]
    %v386 = vld [vmem:[%s3 + $0x38] sm:$0xff]
    %v387 = vld [vmem:[%s3 + $0x40] sm:$0xff]
    %v388 = vld [vmem:[%s3 + $0x48] sm:$0xff]
    %v389 = vlaneseq
    %v390 = vshrl.u32 %v389, 7
    %v391 = vsub.s32 0, %v390
    %v392 = vrot.slane %v378, %v391
    %v395 = vrot.slane %v375, 7
    %vm396 = vcmask 1041409
    %v397 = vsel %vm396, %v395, %v272
    %vm398 = vcmask 654336
    %v399 = vsel %vm398, %v397, 0
    %401 = vmatprep.subr.mxu0 0.0
    %402 = vmatpush1.msra.mxu0 0.0
    %403 = vmatprep.subr.mxu0 0.0
    %404 = vmatpush1.msra.mxu0 0.0
    %405 = vmatprep.subr.mxu0 0.0
    %406 = vmatpush1.msra.mxu0 0.0
    %407 = vmatprep.subr.mxu0 0.0
    %408 = vmatpush1.msra.mxu0 0.0
    %409 = vmatprep.subr.mxu0 0.0
    %410 = vmatpush1.msra.mxu0 0.0
    %411 = vmatprep.subr.mxu0 0.0
    %412 = vmatpush1.msra.mxu0 0.0
    %413 = vmatprep.subr.mxu0 0.0
    %414 = vmatpush1.msra.mxu0 %v388
    %415 = vmatprep.subr.mxu0 0.0
    %416 = vmatpush1.msra.mxu0 %v387
    %417 = vmatprep.subr.mxu0 0.0
    %418 = vmatpush1.msra.mxu0 %v386
    %419 = vmatprep.subr.mxu0 0.0
    %420 = vmatpush1.msra.mxu0 %v385
    %421 = vmatprep.subr.mxu0 0.0
    %422 = vmatpush1.msra.mxu0 %v384
    %423 = vmatprep.subr.mxu0 0.0
    %424 = vmatpush1.msra.mxu0 %v383
    %425 = vmatprep.subr.mxu0 0.0
    %426 = vmatpush1.msra.mxu0 %v382
    %427 = vmatprep.subr.mxu0 0.0
    %428 = vmatpush1.msra.mxu0 %v381
    %429 = vmatprep.subr.mxu0 0.0
    %430 = vmatpush1.msra.mxu0 %v380
    %431 = vmatprep.subr.mxu0 0.0
    %432 = vmatpush1.msra.mxu0 %v379
    %433 = vmatprep.subr.mxu0 0.0
    %434 = vmatpush2.msra.mxu0 0.0
    %435 = vmatprep.subr.mxu0 0.0
    %436 = vmatpush2.msra.mxu0 0.0
    %437 = vmatprep.subr.mxu0 0.0
    %438 = vmatpush2.msra.mxu0 0.0
    %439 = vmatprep.subr.mxu0 0.0
    %440 = vmatpush2.msra.mxu0 0.0
    %441 = vmatprep.subr.mxu0 0.0
    %442 = vmatpush2.msra.mxu0 0.0
    %443 = vmatprep.subr.mxu0 0.0
    %444 = vmatpush2.msra.mxu0 0.0
    %445 = vmatprep.subr.mxu0 0.0
    %446 = vmatpush2.msra.mxu0 0.0
    %447 = vmatprep.subr.mxu0 0.0
    %448 = vmatpush2.msra.mxu0 0.0
    %449 = vmatprep.subr.mxu0 0.0
    %450 = vmatpush2.msra.mxu0 0.0
    %451 = vmatprep.subr.mxu0 0.0
    %452 = vmatpush2.msra.mxu0 0.0
    %453 = vmatprep.subr.mxu0 0.0
    %454 = vmatpush2.msra.mxu0 0.0
    %455 = vmatprep.subr.mxu0 0.0
    %456 = vmatpush2.msra.mxu0 0.0
    %457 = vmatprep.subr.mxu0 0.0
    %458 = vmatpush2.msra.mxu0 0.0
    %459 = vmatprep.subr.mxu0 0.0
    %460 = vmatpush2.msra.mxu0 0.0
    %461 = vmatprep.subr.mxu0 0.0
    %462 = vmatpush2.msra.mxu0 0.0
    %463 = vmatprep.subr.mxu0 0.0
    %464 = vmatpush2.msra.mxu0 0.0
    %465 = vmatprep.mubr.f32.mxu0 0.0
    %466 = vmatmul.mubr.f32.gmra.mxu0 %v399
    %v467 = vpop.f32.mrf.mxu0
    %v468 = vadd.f32 %v392, %v467
    %v469 = vpop.f32.mrf.mxu0
    %470 = vdwg.mxu0
    %v471 = vmax.f32 %v468, 0.0
    %s472 = scalar_lea.vmem %s3, 80
    %v473 = vld [vmem:[%s472] sm:$0xff]
    %v474 = vld [vmem:[%s472 + $0x8] sm:$0xff]
    %v475 = vld [vmem:[%s472 + $0x10] sm:$0xff]
    %v476 = vld [vmem:[%s472 + $0x18] sm:$0xff]
    %v477 = vld [vmem:[%s472 + $0x20] sm:$0xff]
    %v478 = vld [vmem:[%s472 + $0x28] sm:$0xff]
    %v479 = vld [vmem:[%s472 + $0x30] sm:$0xff]
    %v480 = vld [vmem:[%s472 + $0x38] sm:$0xff]
    %v481 = vld [vmem:[%s472 + $0x40] sm:$0xff]
    %v482 = vld [vmem:[%s472 + $0x48] sm:$0xff]
    %v483 = vlaneseq
    %v484 = vshrl.u32 %v483, 7
    %v485 = vsub.s32 1, %v484
    %v486 = vrot.slane %v378, %v485
    %v487 = vrot.slane %v272, 1
    %v488 = vsel %vm396, %v375, %v487
    %v489 = vsel %vm398, %v488, 0
    %491 = vmatprep.subr.mxu0 0.0
    %492 = vmatpush1.msra.mxu0 0.0
    %493 = vmatprep.subr.mxu0 0.0
    %494 = vmatpush1.msra.mxu0 0.0
    %495 = vmatprep.subr.mxu0 0.0
    %496 = vmatpush1.msra.mxu0 0.0
    %497 = vmatprep.subr.mxu0 0.0
    %498 = vmatpush1.msra.mxu0 0.0
    %499 = vmatprep.subr.mxu0 0.0
    %500 = vmatpush1.msra.mxu0 0.0
    %501 = vmatprep.subr.mxu0 0.0
    %502 = vmatpush1.msra.mxu0 0.0
    %503 = vmatprep.subr.mxu0 0.0
    %504 = vmatpush1.msra.mxu0 %v482
    %505 = vmatprep.subr.mxu0 0.0
    %506 = vmatpush1.msra.mxu0 %v481
    %507 = vmatprep.subr.mxu0 0.0
    %508 = vmatpush1.msra.mxu0 %v480
    %509 = vmatprep.subr.mxu0 0.0
    %510 = vmatpush1.msra.mxu0 %v479
    %511 = vmatprep.subr.mxu0 0.0
    %512 = vmatpush1.msra.mxu0 %v478
    %513 = vmatprep.subr.mxu0 0.0
    %514 = vmatpush1.msra.mxu0 %v477
    %515 = vmatprep.subr.mxu0 0.0
    %516 = vmatpush1.msra.mxu0 %v476
    %517 = vmatprep.subr.mxu0 0.0
    %518 = vmatpush1.msra.mxu0 %v475
    %519 = vmatprep.subr.mxu0 0.0
    %520 = vmatpush1.msra.mxu0 %v474
    %521 = vmatprep.subr.mxu0 0.0
    %522 = vmatpush1.msra.mxu0 %v473
    %523 = vmatprep.subr.mxu0 0.0
    %524 = vmatpush2.msra.mxu0 0.0
    %525 = vmatprep.subr.mxu0 0.0
    %526 = vmatpush2.msra.mxu0 0.0
    %527 = vmatprep.subr.mxu0 0.0
    %528 = vmatpush2.msra.mxu0 0.0
    %529 = vmatprep.subr.mxu0 0.0
    %530 = vmatpush2.msra.mxu0 0.0
    %531 = vmatprep.subr.mxu0 0.0
    %532 = vmatpush2.msra.mxu0 0.0
    %533 = vmatprep.subr.mxu0 0.0
    %534 = vmatpush2.msra.mxu0 0.0
    %535 = vmatprep.subr.mxu0 0.0
    %536 = vmatpush2.msra.mxu0 0.0
    %537 = vmatprep.subr.mxu0 0.0
    %538 = vmatpush2.msra.mxu0 0.0
    %539 = vmatprep.subr.mxu0 0.0
    %540 = vmatpush2.msra.mxu0 0.0
    %541 = vmatprep.subr.mxu0 0.0
    %542 = vmatpush2.msra.mxu0 0.0
    %543 = vmatprep.subr.mxu0 0.0
    %544 = vmatpush2.msra.mxu0 0.0
    %545 = vmatprep.subr.mxu0 0.0
    %546 = vmatpush2.msra.mxu0 0.0
    %547 = vmatprep.subr.mxu0 0.0
    %548 = vmatpush2.msra.mxu0 0.0
    %549 = vmatprep.subr.mxu0 0.0
    %550 = vmatpush2.msra.mxu0 0.0
    %551 = vmatprep.subr.mxu0 0.0
    %552 = vmatpush2.msra.mxu0 0.0
    %553 = vmatprep.subr.mxu0 0.0
    %554 = vmatpush2.msra.mxu0 0.0
    %555 = vmatprep.mubr.f32.mxu0 0.0
    %556 = vmatmul.mubr.f32.gmra.mxu0 %v489
    %v557 = vpop.f32.mrf.mxu0
    %v558 = vadd.f32 %v486, %v557
    %v559 = vpop.f32.mrf.mxu0
    %560 = vdwg.mxu0
    %v561 = vmax.f32 %v558, 0.0
    %v562 = vld [vmem:[%s4] sm:$0xff]
    %v563 = vld [vmem:[%s4 + $0x8] sm:$0xff]
    %v564 = vld [vmem:[%s4 + $0x10] sm:$0xff]
    %v565 = vld [vmem:[%s4 + $0x18] sm:$0xff]
    %s566 = scalar_lea.vmem %s4, 32
    %v567 = vld [vmem:[%s566] sm:$0xff]
    %v568 = vld [vmem:[%s566 + $0x8] sm:$0xff]
    %v569 = vld [vmem:[%s566 + $0x10] sm:$0xff]
    %v570 = vld [vmem:[%s566 + $0x18] sm:$0xff]
    %vm571 = vcmask 261120
    %v573 = vsel %vm571, %v561, 0
    %575 = vmatprep.subr.mxu0 0.0
    %576 = vmatpush1.msra.mxu0 0.0
    %577 = vmatprep.subr.mxu0 0.0
    %578 = vmatpush1.msra.mxu0 0.0
    %579 = vmatprep.subr.mxu0 0.0
    %580 = vmatpush1.msra.mxu0 0.0
    %581 = vmatprep.subr.mxu0 0.0
    %582 = vmatpush1.msra.mxu0 0.0
    %583 = vmatprep.subr.mxu0 0.0
    %584 = vmatpush1.msra.mxu0 0.0
    %585 = vmatprep.subr.mxu0 0.0
    %586 = vmatpush1.msra.mxu0 0.0
    %587 = vmatprep.subr.mxu0 0.0
    %588 = vmatpush1.msra.mxu0 0.0
    %589 = vmatprep.subr.mxu0 0.0
    %590 = vmatpush1.msra.mxu0 0.0
    %591 = vmatprep.subr.mxu0 0.0
    %592 = vmatpush1.msra.mxu0 0.0
    %593 = vmatprep.subr.mxu0 0.0
    %594 = vmatpush1.msra.mxu0 0.0
    %595 = vmatprep.subr.mxu0 0.0
    %596 = vmatpush1.msra.mxu0 0.0
    %597 = vmatprep.subr.mxu0 0.0
    %598 = vmatpush1.msra.mxu0 0.0
    %599 = vmatprep.subr.mxu0 0.0
    %600 = vmatpush1.msra.mxu0 %v570
    %601 = vmatprep.subr.mxu0 0.0
    %602 = vmatpush1.msra.mxu0 %v569
    %603 = vmatprep.subr.mxu0 0.0
    %604 = vmatpush1.msra.mxu0 %v568
    %605 = vmatprep.subr.mxu0 0.0
    %606 = vmatpush1.msra.mxu0 %v567
    %607 = vmatprep.subr.mxu0 0.0
    %608 = vmatpush2.msra.mxu0 0.0
    %609 = vmatprep.subr.mxu0 0.0
    %610 = vmatpush2.msra.mxu0 0.0
    %611 = vmatprep.subr.mxu0 0.0
    %612 = vmatpush2.msra.mxu0 0.0
    %613 = vmatprep.subr.mxu0 0.0
    %614 = vmatpush2.msra.mxu0 0.0
    %615 = vmatprep.subr.mxu0 0.0
    %616 = vmatpush2.msra.mxu0 0.0
    %617 = vmatprep.subr.mxu0 0.0
    %618 = vmatpush2.msra.mxu0 0.0
    %619 = vmatprep.subr.mxu0 0.0
    %620 = vmatpush2.msra.mxu0 0.0
    %621 = vmatprep.subr.mxu0 0.0
    %622 = vmatpush2.msra.mxu0 0.0
    %623 = vmatprep.subr.mxu0 0.0
    %624 = vmatpush2.msra.mxu0 0.0
    %625 = vmatprep.subr.mxu0 0.0
    %626 = vmatpush2.msra.mxu0 0.0
    %627 = vmatprep.subr.mxu0 0.0
    %628 = vmatpush2.msra.mxu0 0.0
    %629 = vmatprep.subr.mxu0 0.0
    %630 = vmatpush2.msra.mxu0 0.0
    %631 = vmatprep.subr.mxu0 0.0
    %632 = vmatpush2.msra.mxu0 0.0
    %633 = vmatprep.subr.mxu0 0.0
    %634 = vmatpush2.msra.mxu0 0.0
    %635 = vmatprep.subr.mxu0 0.0
    %636 = vmatpush2.msra.mxu0 0.0
    %637 = vmatprep.subr.mxu0 0.0
    %638 = vmatpush2.msra.mxu0 0.0
    %639 = vmatprep.mubr.f32.mxu0 0.0
    %640 = vmatmul.mubr.f32.gmra.mxu0 %v573
    %v641 = vpop.f32.mrf.mxu0
    %v642 = vadd.f32 0.0, %v641
    %v643 = vpop.f32.mrf.mxu0
    %644 = vdwg.mxu0
    %v646 = vsel %vm571, %v471, 0
    %648 = vmatprep.subr.mxu0 0.0
    %649 = vmatpush1.msra.mxu0 0.0
    %650 = vmatprep.subr.mxu0 0.0
    %651 = vmatpush1.msra.mxu0 0.0
    %652 = vmatprep.subr.mxu0 0.0
    %653 = vmatpush1.msra.mxu0 0.0
    %654 = vmatprep.subr.mxu0 0.0
    %655 = vmatpush1.msra.mxu0 0.0
    %656 = vmatprep.subr.mxu0 0.0
    %657 = vmatpush1.msra.mxu0 0.0
    %658 = vmatprep.subr.mxu0 0.0
    %659 = vmatpush1.msra.mxu0 0.0
    %660 = vmatprep.subr.mxu0 0.0
    %661 = vmatpush1.msra.mxu0 0.0
    %662 = vmatprep.subr.mxu0 0.0
    %663 = vmatpush1.msra.mxu0 0.0
    %664 = vmatprep.subr.mxu0 0.0
    %665 = vmatpush1.msra.mxu0 0.0
    %666 = vmatprep.subr.mxu0 0.0
    %667 = vmatpush1.msra.mxu0 0.0
    %668 = vmatprep.subr.mxu0 0.0
    %669 = vmatpush1.msra.mxu0 0.0
    %670 = vmatprep.subr.mxu0 0.0
    %671 = vmatpush1.msra.mxu0 0.0
    %672 = vmatprep.subr.mxu0 0.0
    %673 = vmatpush1.msra.mxu0 %v565
    %674 = vmatprep.subr.mxu0 0.0
    %675 = vmatpush1.msra.mxu0 %v564
    %676 = vmatprep.subr.mxu0 0.0
    %677 = vmatpush1.msra.mxu0 %v563
    %678 = vmatprep.subr.mxu0 0.0
    %679 = vmatpush1.msra.mxu0 %v562
    %680 = vmatprep.subr.mxu0 0.0
    %681 = vmatpush2.msra.mxu0 0.0
    %682 = vmatprep.subr.mxu0 0.0
    %683 = vmatpush2.msra.mxu0 0.0
    %684 = vmatprep.subr.mxu0 0.0
    %685 = vmatpush2.msra.mxu0 0.0
    %686 = vmatprep.subr.mxu0 0.0
    %687 = vmatpush2.msra.mxu0 0.0
    %688 = vmatprep.subr.mxu0 0.0
    %689 = vmatpush2.msra.mxu0 0.0
    %690 = vmatprep.subr.mxu0 0.0
    %691 = vmatpush2.msra.mxu0 0.0
    %692 = vmatprep.subr.mxu0 0.0
    %693 = vmatpush2.msra.mxu0 0.0
    %694 = vmatprep.subr.mxu0 0.0
    %695 = vmatpush2.msra.mxu0 0.0
    %696 = vmatprep.subr.mxu0 0.0
    %697 = vmatpush2.msra.mxu0 0.0
    %698 = vmatprep.subr.mxu0 0.0
    %699 = vmatpush2.msra.mxu0 0.0
    %700 = vmatprep.subr.mxu0 0.0
    %701 = vmatpush2.msra.mxu0 0.0
    %702 = vmatprep.subr.mxu0 0.0
    %703 = vmatpush2.msra.mxu0 0.0
    %704 = vmatprep.subr.mxu0 0.0
    %705 = vmatpush2.msra.mxu0 0.0
    %706 = vmatprep.subr.mxu0 0.0
    %707 = vmatpush2.msra.mxu0 0.0
    %708 = vmatprep.subr.mxu0 0.0
    %709 = vmatpush2.msra.mxu0 0.0
    %710 = vmatprep.subr.mxu0 0.0
    %711 = vmatpush2.msra.mxu0 0.0
    %712 = vmatprep.mubr.f32.mxu0 0.0
    %713 = vmatmul.mubr.f32.gmra.mxu0 %v646
    %v714 = vpop.f32.mrf.mxu0
    %v715 = vadd.f32 %v642, %v714
    %v716 = vpop.f32.mrf.mxu0
    %717 = vdwg.mxu0
    %719 = vset.pattern.permute.xlu0 0
    %720 = vperm.xlu0 %719, %v24
    %v721 = vpop.permute.xlu0 %720
    %v723 = vlaneseq
    %v724 = vshrl.u32 %v723, 7
    %v725 = vsub.s32 2, %v724
    %v726 = vrot.slane %v378, %v725
    %v727 = vmul.f32 %v721, %v726
    %v728 = vadd.f32 %v715, %v727
    %v729 = vlaneseq
    %v730 = vshrl.u32 %v729, 7
    %v731 = vsub.s32 3, %v730
    %v732 = vrot.slane %v378, %v731
    %v733 = vadd.f32 %v728, %v732
    %v734 = vmax.f32 %v733, 0.0
    %vm735 = vcmask 254976
    %736 = vst.msk [vmem:[#allocation2] sm:$0x3] %vm735, %v734
    // Predicated region
    $region26: #{gn_forward.1} parent=1 // pred_check
      _
    $region27: #{gn_forward.1} parent=1 // pred_check_branch
      %738 = sbr.rel (0) target = $region29
    $region28: #{gn_forward.1} parent=1 // pred_region
      %s740 = ssub.s32 32, 32
      %741 = vsyncadd [#allocation3], %s740
      %s743 = sshll.u32 [#allocation2], 4
      %s744 = int_to_ptr.vmem [resolvable:$true] %s743
      %746 = dma.vmem_to_hbm [thread:$0]  %s744, 32, %s6, [#allocation3]
    $region29: #{gn_forward.1} parent=1 // pred_fallthru
      _
    // Predicated region
    $region30: #{gn_forward.1} parent=1 // pred_check
      _
    $region31: #{gn_forward.1} parent=1 // pred_check_branch
      %748 = sbr.rel (0) target = $region33
    $region32: #{gn_forward.1} parent=1 // pred_region
      %749 = dma.done [#allocation3], 32
    $region33: #{gn_forward.1} parent=1 // pred_fallthru
      _
    %750 = vsyncpa [#allocation3], 1

</llo_original>
